<compile_context>
chip_gen: v6e
topology: v6e:2x2x1
jax: 0.10.0
libtpu: 0.0.40
codegen_flags: <defaults>
</compile_context>

<pallas_src>
import functools

import jax
import jax.numpy as jnp
from jax.experimental import pallas as pl
from jax.experimental.pallas import tpu as pltpu


def _round_up(x, m):
    return ((x + m - 1) // m) * m


def _embeddings_kernel(ids_smem, tts_ref, ptab_ref, ttab_ref, wtab_hbm,
                       out_ref, wbuf, sems):
    """One grid step: one batch row x one tile of `tn` tokens.

    ids_smem : (B, Sp) int32 SMEM      scalar-prefetched input_ids
    tts_ref  : (1, tn, 1) int32 VMEM   token-type ids for this tile
    ptab_ref : (tn, H) VMEM            position-embedding rows for this tile
    ttab_ref : (T, H) VMEM             full token-type table (T is tiny)
    wtab_hbm : (V, H) HBM (pl.ANY)     word-embedding table, gathered by DMA
    out_ref  : (1, tn, H) VMEM         output tile
    wbuf     : (tn, H) VMEM scratch    gathered word rows
    sems     : (W,) DMA semaphores     W-deep in-flight gather window
    """
    b = pl.program_id(0)
    s = pl.program_id(1)
    tn, H = wbuf.shape
    V = wtab_hbm.shape[0]
    T = ttab_ref.shape[0]
    W = sems.shape[0]
    s0 = s * tn

    def issue(t):
        row = ids_smem[b, s0 + t]
        # Clamp so a bad / padded id can never become an unchecked OOB DMA.
        row = jnp.minimum(jnp.maximum(row, 0), V - 1)
        pltpu.make_async_copy(wtab_hbm.at[pl.ds(row, 1)],
                              wbuf.at[pl.ds(t, 1)],
                              sems.at[t % W]).start()

    # Prime a W-deep window of row DMAs (overlapped gather).
    @pl.loop(0, W)
    def _prime(t):
        issue(t)

    # Drain: wait for row t, then refill the window with row t + W.
    @pl.loop(0, tn)
    def _drain(t):
        pltpu.make_async_copy(wtab_hbm.at[pl.ds(0, 1)],
                              wbuf.at[pl.ds(t, 1)],
                              sems.at[t % W]).wait()

        @pl.when(t + W < tn)
        def _():
            issue(t + W)

    word = wbuf[...].astype(jnp.float32)        # (tn, H) gathered word rows
    pos = ptab_ref[...].astype(jnp.float32)     # (tn, H) contiguous pos rows
    tts = tts_ref[0]                            # (tn, 1) int32 token-type ids

    # Token-type lookup as a cheap VPU select over the (tiny) table rows.
    ttab = ttab_ref[...].astype(jnp.float32)    # (T, H)
    tok = jnp.zeros((tn, H), jnp.float32)
    for j in range(T):                          # static loop; T == 2 for BERT
        tok = tok + jnp.where(tts == j, ttab[j:j + 1, :], 0.0)

    out_ref[0] = (word + pos + tok).astype(out_ref.dtype)


@functools.partial(jax.jit, static_argnames=("token_tile", "dma_window"))
def bert_embeddings_without_norm(
    input_ids,            # (B, S) int32
    token_type_ids,       # (B, S) int32
    position_ids,         # (1, max_position_embeddings) int32 (registered buffer)
    word_emb,             # (vocab_size, H)
    pos_emb,              # (max_position_embeddings, H)
    tok_type_emb,         # (type_vocab_size, H)
    *,
    token_tile: int = 256,
    dma_window: int = 8,
):
    B, S = input_ids.shape
    V, H = word_emb.shape
    T = tok_type_emb.shape[0]

    # Tile sizing: big tiles by default, clamped so a short sequence is only
    # padded up to the next multiple of 8 (sublane alignment).
    token_tile = max(8, min(token_tile, _round_up(S, 8)))
    token_tile = _round_up(token_tile, 8)
    Sp = _round_up(S, token_tile)
    n_s = Sp // token_tile
    W = max(1, min(dma_window, token_tile))
    pad_s = Sp - S

    ids = jnp.pad(input_ids.astype(jnp.int32), ((0, 0), (0, pad_s)))
    tts = jnp.pad(token_type_ids.astype(jnp.int32), ((0, 0), (0, pad_s)))
    tts = tts.reshape(B, Sp, 1)

    # position_ids is the module's arange buffer broadcast over batch, so the
    # rows each tile needs are contiguous; resolve the (tiny, batch-independent)
    # row selection once here and let the BlockSpec pipeline stream the slice.
    pos_idx = position_ids[0, :S].astype(jnp.int32)
    pos_rows = jnp.take(pos_emb, pos_idx, axis=0)          # (S, H)
    pos_rows = jnp.pad(pos_rows, ((0, pad_s), (0, 0)))     # (Sp, H)

    out = pl.pallas_call(
        _embeddings_kernel,
        out_shape=jax.ShapeDtypeStruct((B, Sp, H), word_emb.dtype),
        grid_spec=pltpu.PrefetchScalarGridSpec(
            num_scalar_prefetch=1,                          # input_ids -> SMEM
            grid=(B, n_s),
            in_specs=[
                pl.BlockSpec((1, token_tile, 1), lambda b, s, ids: (b, s, 0)),  # token-type ids
                pl.BlockSpec((token_tile, H), lambda b, s, ids: (s, 0)),        # position rows
                pl.BlockSpec((T, H), lambda b, s, ids: (0, 0)),                 # token-type table
                pl.BlockSpec(memory_space=pl.ANY),                               # word table (HBM)
            ],
            out_specs=pl.BlockSpec((1, token_tile, H), lambda b, s, ids: (b, s, 0)),
            scratch_shapes=[
                pltpu.VMEM((token_tile, H), word_emb.dtype),   # gathered word rows
                pltpu.SemaphoreType.DMA((W,)),                 # gather DMA window
            ],
        ),
        compiler_params=pltpu.CompilerParams(
            dimension_semantics=("parallel", "parallel"),
        ),
    )(ids, tts, pos_rows, tok_type_emb, word_emb)

    return out[:, :S, :]


def _reference(input_ids, token_type_ids, position_ids, word_emb, pos_emb, tok_type_emb):
    B, S = input_ids.shape
    pid = jnp.broadcast_to(position_ids[:, :S], (B, S))
    return (
        jnp.take(word_emb, input_ids, axis=0)
        + jnp.take(pos_emb, pid, axis=0)
        + jnp.take(tok_type_emb, token_type_ids, axis=0)
    )


if __name__ == "__main__":
    # Small, module-consistent config (hidden=128 keeps the output lane-dense).
    vocab_size = 64
    hidden_size = 128
    max_position_embeddings = 16
    type_vocab_size = 2
    pad_token_id = 1
    B, S = 2, 8

    key = jax.random.PRNGKey(0)
    k_w, k_p, k_t, k_ids = jax.random.split(key, 4)

    # BERT-style N(0, 0.02) init; padding_idx row zeroed, matching
    # nn.Embedding(padding_idx=...) initialization.
    word_emb = 0.02 * jax.random.normal(k_w, (vocab_size, hidden_size), jnp.float32)
    word_emb = word_emb.at[pad_token_id].set(0.0)
    pos_emb = 0.02 * jax.random.normal(k_p, (max_position_embeddings, hidden_size), jnp.float32)
    tok_type_emb = 0.02 * jax.random.normal(k_t, (type_vocab_size, hidden_size), jnp.float32)

    # Registered buffer: position_ids = arange(max_position_embeddings)[None, :]
    position_ids = jnp.arange(max_position_embeddings, dtype=jnp.int32)[None, :]

    input_ids = jax.random.randint(k_ids, (B, S), 0, vocab_size, dtype=jnp.int32)
    token_type_ids = jnp.zeros((B, S), dtype=jnp.int32)
    token_type_ids = token_type_ids.at[:, S // 2:].set(1)   # exercise both type rows

    out = bert_embeddings_without_norm(
        input_ids, token_type_ids, position_ids, word_emb, pos_emb, tok_type_emb
    )
    out = jax.block_until_ready(out)

    ref = _reference(input_ids, token_type_ids, position_ids, word_emb, pos_emb, tok_type_emb)
    assert out.shape == (B, S, hidden_size), out.shape
    assert jnp.allclose(out, ref, atol=1e-6, rtol=1e-6), "mismatch vs reference"

    print("KERNEL_OK")
</pallas_src>

<mosaic_0001>
module attributes {stable_mosaic.version = 11 : i64} {
  func.func @_embeddings_kernel(%arg0: i32, %arg1: i32, %arg2: memref<2x8xi32, #tpu.memory_space<smem>>, %arg3: memref<1x8x1xi32, #tpu.memory_space<vmem>>, %arg4: memref<8x128xf32, #tpu.memory_space<vmem>>, %arg5: memref<2x128xf32, #tpu.memory_space<vmem>>, %arg6: memref<64x128xf32, #tpu.memory_space<any>>, %arg7: memref<1x8x128xf32, #tpu.memory_space<vmem>>, %arg8: memref<8x128xf32, #tpu.memory_space<vmem>>, %arg9: memref<8x!tpu.dma_semaphore, #tpu.memory_space<semaphore_mem>>) attributes {dimension_semantics = [#tpu.dimension_semantics<parallel>, #tpu.dimension_semantics<parallel>], iteration_bounds = array<i64: 2, 1>, scalar_prefetch = 1 : i64, scratch_operands = 2 : i64, tpu.core_type = #tpu.core_type<tc>, window_params = [{transform_indices = @transform_0, window_bounds = array<i64: 1, 8, 1>}, {transform_indices = @transform_1, window_bounds = array<i64: 8, 128>}, {pipeline_mode = #tpu.pipeline_mode<synchronous>, transform_indices = @transform_2, window_bounds = array<i64: 2, 128>}, {}, {transform_indices = @transform_4, window_bounds = array<i64: 1, 8, 128>}]} {
    %c8_i32 = arith.constant 8 : i32
    %0 = arith.muli %arg1, %c8_i32 : i32
    %c0_i32 = arith.constant 0 : i32
    %c8_i32_0 = arith.constant 8 : i32
    %1 = arith.addi %c0_i32, %c8_i32_0 : i32
    %c1_i32 = arith.constant 1 : i32
    scf.for %arg10 = %c0_i32 to %1 step %c1_i32  : i32 {
      %c1_i32_21 = arith.constant 1 : i32
      %34 = arith.muli %arg10, %c1_i32_21 : i32
      %c0_i32_22 = arith.constant 0 : i32
      %35 = arith.addi %c0_i32_22, %34 : i32
      %36 = arith.addi %0, %35 : i32
      %37 = arith.index_cast %arg0 : i32 to index
      %38 = arith.index_cast %36 : i32 to index
      %39 = memref.load %arg2[%37, %38] : memref<2x8xi32, #tpu.memory_space<smem>>
      %c0_i32_23 = arith.constant 0 : i32
      %40 = arith.maxsi %39, %c0_i32_23 : i32
      %c63_i32 = arith.constant 63 : i32
      %41 = arith.minsi %40, %c63_i32 : i32
      %c8_i32_24 = arith.constant 8 : i32
      %c0_i32_25 = arith.constant 0 : i32
      %42 = arith.cmpi eq, %c8_i32_24, %c0_i32_25 : i32
      %c1_i32_26 = arith.constant 1 : i32
      %43 = arith.select %42, %c1_i32_26, %c8_i32_24 : i32
      %44 = arith.remsi %35, %43 : i32
      %c0_i32_27 = arith.constant 0 : i32
      %45 = arith.cmpi ne, %44, %c0_i32_27 : i32
      %c0_i32_28 = arith.constant 0 : i32
      %46 = arith.cmpi slt, %44, %c0_i32_28 : i32
      %c0_i32_29 = arith.constant 0 : i32
      %47 = arith.cmpi slt, %43, %c0_i32_29 : i32
      %48 = arith.xori %46, %47 : i1
      %49 = arith.andi %48, %45 : i1
      %50 = arith.addi %44, %43 : i32
      %51 = arith.select %49, %50, %44 : i32
      %c0_i32_30 = arith.constant 0 : i32
      %52 = tpu.memref_slice %arg6[%41, %c0_i32_30] : memref<64x128xf32, #tpu.memory_space<any>> -> memref<1x128xf32, #tpu.memory_space<any>>
      %c0_i32_31 = arith.constant 0 : i32
      %53 = tpu.memref_slice %arg8[%35, %c0_i32_31] : memref<8x128xf32, #tpu.memory_space<vmem>> -> memref<1x128xf32, #tpu.memory_space<vmem>>
      %54 = tpu.memref_slice %arg9[%51] : memref<8x!tpu.dma_semaphore, #tpu.memory_space<semaphore_mem>> -> memref<1x!tpu.dma_semaphore, #tpu.memory_space<semaphore_mem>>
      %55 = tpu.memref_squeeze %54 : memref<1x!tpu.dma_semaphore, #tpu.memory_space<semaphore_mem>> -> memref<!tpu.dma_semaphore, #tpu.memory_space<semaphore_mem>>
      tpu.enqueue_dma source(%52 : memref<1x128xf32, #tpu.memory_space<any>>) target(%53 : memref<1x128xf32, #tpu.memory_space<vmem>>) target_semaphore(%55 : memref<!tpu.dma_semaphore, #tpu.memory_space<semaphore_mem>>)
    }
    %c8_i32_1 = arith.constant 8 : i32
    %c0_i32_2 = arith.constant 0 : i32
    %c8_i32_3 = arith.constant 8 : i32
    %2 = arith.addi %c0_i32_2, %c8_i32_3 : i32
    %c1_i32_4 = arith.constant 1 : i32
    scf.for %arg10 = %c0_i32_2 to %2 step %c1_i32_4  : i32 {
      %c1_i32_21 = arith.constant 1 : i32
      %34 = arith.muli %arg10, %c1_i32_21 : i32
      %c0_i32_22 = arith.constant 0 : i32
      %35 = arith.addi %c0_i32_22, %34 : i32
      %c8_i32_23 = arith.constant 8 : i32
      %c0_i32_24 = arith.constant 0 : i32
      %36 = arith.cmpi eq, %c8_i32_23, %c0_i32_24 : i32
      %c1_i32_25 = arith.constant 1 : i32
      %37 = arith.select %36, %c1_i32_25, %c8_i32_23 : i32
      %38 = arith.remsi %35, %37 : i32
      %c0_i32_26 = arith.constant 0 : i32
      %39 = arith.cmpi ne, %38, %c0_i32_26 : i32
      %c0_i32_27 = arith.constant 0 : i32
      %40 = arith.cmpi slt, %38, %c0_i32_27 : i32
      %c0_i32_28 = arith.constant 0 : i32
      %41 = arith.cmpi slt, %37, %c0_i32_28 : i32
      %42 = arith.xori %40, %41 : i1
      %43 = arith.andi %42, %39 : i1
      %44 = arith.addi %38, %37 : i32
      %45 = arith.select %43, %44, %38 : i32
      %c0_i32_29 = arith.constant 0 : i32
      %c0_i32_30 = arith.constant 0 : i32
      %46 = tpu.memref_slice %arg6[%c0_i32_29, %c0_i32_30] : memref<64x128xf32, #tpu.memory_space<any>> -> memref<1x128xf32, #tpu.memory_space<any>>
      %c0_i32_31 = arith.constant 0 : i32
      %47 = tpu.memref_slice %arg8[%35, %c0_i32_31] : memref<8x128xf32, #tpu.memory_space<vmem>> -> memref<1x128xf32, #tpu.memory_space<vmem>>
      %48 = tpu.memref_slice %arg9[%45] : memref<8x!tpu.dma_semaphore, #tpu.memory_space<semaphore_mem>> -> memref<1x!tpu.dma_semaphore, #tpu.memory_space<semaphore_mem>>
      %49 = tpu.memref_squeeze %48 : memref<1x!tpu.dma_semaphore, #tpu.memory_space<semaphore_mem>> -> memref<!tpu.dma_semaphore, #tpu.memory_space<semaphore_mem>>
      tpu.wait_dma2 semaphore(%49 : memref<!tpu.dma_semaphore, #tpu.memory_space<semaphore_mem>>) src(%46 : memref<1x128xf32, #tpu.memory_space<any>>) dst(%47 : memref<1x128xf32, #tpu.memory_space<vmem>>)
      %c8_i32_32 = arith.constant 8 : i32
      %50 = arith.addi %35, %c8_i32_32 : i32
      %c8_i32_33 = arith.constant 8 : i32
      %51 = arith.cmpi slt, %50, %c8_i32_33 : i32
      %52 = arith.extui %51 : i1 to i32
      %c0_i32_34 = arith.constant 0 : i32
      %53 = arith.cmpi ne, %52, %c0_i32_34 : i32
      scf.if %53 {
        %c8_i32_35 = arith.constant 8 : i32
        %54 = arith.addi %35, %c8_i32_35 : i32
        %55 = arith.addi %0, %54 : i32
        %56 = arith.index_cast %arg0 : i32 to index
        %57 = arith.index_cast %55 : i32 to index
        %58 = memref.load %arg2[%56, %57] : memref<2x8xi32, #tpu.memory_space<smem>>
        %c0_i32_36 = arith.constant 0 : i32
        %59 = arith.maxsi %58, %c0_i32_36 : i32
        %c63_i32 = arith.constant 63 : i32
        %60 = arith.minsi %59, %c63_i32 : i32
        %c8_i32_37 = arith.constant 8 : i32
        %c0_i32_38 = arith.constant 0 : i32
        %61 = arith.cmpi eq, %c8_i32_37, %c0_i32_38 : i32
        %c1_i32_39 = arith.constant 1 : i32
        %62 = arith.select %61, %c1_i32_39, %c8_i32_37 : i32
        %63 = arith.remsi %54, %62 : i32
        %c0_i32_40 = arith.constant 0 : i32
        %64 = arith.cmpi ne, %63, %c0_i32_40 : i32
        %c0_i32_41 = arith.constant 0 : i32
        %65 = arith.cmpi slt, %63, %c0_i32_41 : i32
        %c0_i32_42 = arith.constant 0 : i32
        %66 = arith.cmpi slt, %62, %c0_i32_42 : i32
        %67 = arith.xori %65, %66 : i1
        %68 = arith.andi %67, %64 : i1
        %69 = arith.addi %63, %62 : i32
        %70 = arith.select %68, %69, %63 : i32
        %c0_i32_43 = arith.constant 0 : i32
        %71 = tpu.memref_slice %arg6[%60, %c0_i32_43] : memref<64x128xf32, #tpu.memory_space<any>> -> memref<1x128xf32, #tpu.memory_space<any>>
        %c0_i32_44 = arith.constant 0 : i32
        %72 = tpu.memref_slice %arg8[%54, %c0_i32_44] : memref<8x128xf32, #tpu.memory_space<vmem>> -> memref<1x128xf32, #tpu.memory_space<vmem>>
        %73 = tpu.memref_slice %arg9[%70] : memref<8x!tpu.dma_semaphore, #tpu.memory_space<semaphore_mem>> -> memref<1x!tpu.dma_semaphore, #tpu.memory_space<semaphore_mem>>
        %74 = tpu.memref_squeeze %73 : memref<1x!tpu.dma_semaphore, #tpu.memory_space<semaphore_mem>> -> memref<!tpu.dma_semaphore, #tpu.memory_space<semaphore_mem>>
        tpu.enqueue_dma source(%71 : memref<1x128xf32, #tpu.memory_space<any>>) target(%72 : memref<1x128xf32, #tpu.memory_space<vmem>>) target_semaphore(%74 : memref<!tpu.dma_semaphore, #tpu.memory_space<semaphore_mem>>)
      } else {
      }
    }
    %c8_i32_5 = arith.constant 8 : i32
    %c0 = arith.constant 0 : index
    %c0_6 = arith.constant 0 : index
    %3 = vector.load %arg8[%c0, %c0_6] : memref<8x128xf32, #tpu.memory_space<vmem>>, vector<8x128xf32>
    %c0_7 = arith.constant 0 : index
    %c0_8 = arith.constant 0 : index
    %4 = vector.load %arg4[%c0_7, %c0_8] : memref<8x128xf32, #tpu.memory_space<vmem>>, vector<8x128xf32>
    %c0_9 = arith.constant 0 : index
    %c0_10 = arith.constant 0 : index
    %c0_11 = arith.constant 0 : index
    %5 = vector.load %arg3[%c0_9, %c0_10, %c0_11] : memref<1x8x1xi32, #tpu.memory_space<vmem>>, vector<1x8x1xi32>
    %6 = vector.shape_cast %5 : vector<1x8x1xi32> to vector<8x1xi32>
    %c0_12 = arith.constant 0 : index
    %c0_13 = arith.constant 0 : index
    %7 = vector.load %arg5[%c0_12, %c0_13] : memref<2x128xf32, #tpu.memory_space<vmem>>, vector<2x128xf32>
    %cst = arith.constant 0.000000e+00 : f32
    %8 = vector.broadcast %cst : f32 to vector<8x128xf32>
    %c0_i32_14 = arith.constant 0 : i32
    %9 = vector.broadcast %c0_i32_14 : i32 to vector<8x1xi32>
    %10 = arith.cmpi eq, %6, %9 : vector<8x1xi32>
    %11 = vector.extract_strided_slice %7 {offsets = [0, 0], sizes = [1, 128], strides = [1, 1]} : vector<2x128xf32> to vector<1x128xf32>
    %cst_15 = arith.constant 0.000000e+00 : f32
    %12 = vector.shape_cast %10 : vector<8x1xi1> to vector<8x1xi1>
    %13 = vector.broadcast %12 : vector<8x1xi1> to vector<8x128xi1>
    %14 = vector.shape_cast %11 : vector<1x128xf32> to vector<1x128xf32>
    %15 = vector.broadcast %14 : vector<1x128xf32> to vector<8x128xf32>
    %16 = vector.broadcast %cst_15 : f32 to vector<8x128xf32>
    %17 = arith.select %13, %15, %16 : vector<8x128xi1>, vector<8x128xf32>
    %18 = arith.addf %8, %17 : vector<8x128xf32>
    %c1_i32_16 = arith.constant 1 : i32
    %19 = vector.broadcast %c1_i32_16 : i32 to vector<8x1xi32>
    %20 = arith.cmpi eq, %6, %19 : vector<8x1xi32>
    %21 = vector.extract_strided_slice %7 {offsets = [1, 0], sizes = [1, 128], strides = [1, 1]} : vector<2x128xf32> to vector<1x128xf32>
    %cst_17 = arith.constant 0.000000e+00 : f32
    %22 = vector.shape_cast %20 : vector<8x1xi1> to vector<8x1xi1>
    %23 = vector.broadcast %22 : vector<8x1xi1> to vector<8x128xi1>
    %24 = vector.shape_cast %21 : vector<1x128xf32> to vector<1x128xf32>
    %25 = vector.broadcast %24 : vector<1x128xf32> to vector<8x128xf32>
    %26 = vector.broadcast %cst_17 : f32 to vector<8x128xf32>
    %27 = arith.select %23, %25, %26 : vector<8x128xi1>, vector<8x128xf32>
    %28 = arith.addf %18, %27 : vector<8x128xf32>
    %29 = arith.addf %3, %4 : vector<8x128xf32>
    %30 = arith.addf %29, %28 : vector<8x128xf32>
    %c0_18 = arith.constant 0 : index
    %c0_19 = arith.constant 0 : index
    %c0_20 = arith.constant 0 : index
    %31 = vector.load %arg7[%c0_18, %c0_19, %c0_20] : memref<1x8x128xf32, #tpu.memory_space<vmem>>, vector<1x8x128xf32>
    %32 = vector.shape_cast %31 : vector<1x8x128xf32> to vector<8x128xf32>
    %33 = vector.shape_cast %30 : vector<8x128xf32> to vector<1x8x128xf32>
    tpu.vector_store %arg7[%c0_18, %c0_19, %c0_20], %33 {strides = array<i32>} : memref<1x8x128xf32, #tpu.memory_space<vmem>>, vector<1x8x128xf32>,
    return
  }
  func.func @transform_0(%arg0: i32, %arg1: i32, %arg2: memref<2x8xi32, #tpu.memory_space<smem>>) -> (i32, i32, i32) {
    %c0_i32 = arith.constant 0 : i32
    %c0_i32_0 = arith.constant 0 : i32
    return %arg0, %arg1, %c0_i32 : i32, i32, i32
  }
  func.func @transform_1(%arg0: i32, %arg1: i32, %arg2: memref<2x8xi32, #tpu.memory_space<smem>>) -> (i32, i32) {
    %c0_i32 = arith.constant 0 : i32
    %c0_i32_0 = arith.constant 0 : i32
    return %arg1, %c0_i32 : i32, i32
  }
  func.func @transform_2(%arg0: i32, %arg1: i32, %arg2: memref<2x8xi32, #tpu.memory_space<smem>>) -> (i32, i32) {
    %c0_i32 = arith.constant 0 : i32
    %c0_i32_0 = arith.constant 0 : i32
    %c0_i32_1 = arith.constant 0 : i32
    return %c0_i32, %c0_i32_0 : i32, i32
  }
  func.func @transform_4(%arg0: i32, %arg1: i32, %arg2: memref<2x8xi32, #tpu.memory_space<smem>>) -> (i32, i32, i32) {
    %c0_i32 = arith.constant 0 : i32
    %c0_i32_0 = arith.constant 0 : i32
    return %arg0, %arg1, %c0_i32 : i32, i32, i32
  }
}

</mosaic_0001>

<llo_original>
// kernel: bert_embeddings_without_norm.1
$region0: #{bert_embeddings_without_norm.1}
  #allocation0 [shape = 'u32[]', space=smem, size = 0x4, offset = 0x4, fixed_abs, tag = 'smem constant byte address 0x4 - core index']
  #allocation1 [shape = 'u32[144,128]{1,0:T(1,128)}', space=vmem, size = 0x12000, scoped, tag = 'internal scratch']
  #allocation2 [shape = 'f32[8,128]{1,0:T(8,128)}', space=vmem, size = 0x1000, scoped, tag = 'scratch operand']
  #allocation3 [shape = 's32[8]{0}', space=sflag, size = 0x20, scoped, tag = 'scratch operand']
  #allocation4 [shape = 's32[1]{0}', space=sflag, size = 0x4, scoped, tag = 'scoped memory for bert_embeddings_without_norm.1']
  #allocation5 [shape = 'u8[1024]{0}', space=smem, size = 0x400, scoped, tag = 'prefetched SMEM operand 0']
  #allocation8 [shape = 's32[]', space=sflag, size = 0x4, offset = 0, fixed_abs, tag = 'sflag constant byte address 0x0 - dummy sync flag']
  #allocation9 [shape = 's32[]', space=sflag, size = 0x4, offset = 0, fixed_abs, tag = 'sflag constant byte address 0x0 - dummy sync flag']
  %s0 = inlined_call_operand.vmem [shape: s32[2,8], index: 0, kind: input, shape index: {}]
  %s1 = inlined_call_operand.vmem [shape: s32[2,8,1], index: 1, kind: input, shape index: {}]
  %s2 = inlined_call_operand.vmem [shape: f32[8,128], index: 2, kind: input, shape index: {}]
  %s3 = inlined_call_operand.vmem [shape: f32[2,128], index: 3, kind: input, shape index: {}]
  %s4 = inlined_call_operand.vmem [shape: f32[64,128], index: 4, kind: input, shape index: {}]
  %s5 = inlined_call_operand.hbm [shape: f32[2,8,128], index: 5, kind: output, shape index: {}]
  %s6 = sld [smem:[#allocation0]]
  $region123: #{bert_embeddings_without_norm.1} parent=0
    _
  %s8 = ssub.s32 1, %s6
  %s9 = scalar_select 0, %s8, %s6
  %s10 = sshll.u32 %s0, 4
  %s11 = int_to_ptr.vmem [resolvable:$true] %s10
  %13 = dma.vmem_to_smem %s11, 32, [#allocation5], [#allocation4]
  %14 = dma.done [#allocation4], 32
  %15 = sfence
  $region1: #{bert_embeddings_without_norm.1} parent=0
    #allocation6 [shape = 'u8[8192]{0}', space=vmem, size = 0x2000, scoped, tag = 'output window, operand 0']
    #allocation7 [shape = 's32[2]{0}', space=sflag, size = 0x8, scoped, tag = 'scoped memory for bert_embeddings_without_norm.1']
    %16 = vsyncpa [#allocation7], 0
    %s17 = scalar_lea.sflag [#allocation7], 1
    %18 = vsyncpa %s17, 0
    loop: start=0, step=1, limit=4
    $region2: #{bert_embeddings_without_norm.1} parent=1 // loop_pre_header
      _
    $region3: #{bert_embeddings_without_norm.1} parent=1 // loop_header
      %s20 = sphi 0, %s24
      %p21 = scmp.ge.s32.totalorder %s20, 4
      %s27 = sphi 0, %s39
      %s28 = sphi 0, %s35
      %s29 = sphi 0, %s27
      %s30 = sphi 0, %s28
      %s31 = sphi 0, %s29
      %s32 = sphi 0, %s30
      %s44 = sphi 0, %s46
      %s47 = sphi 0, %s44
      %s48 = sphi 0, %s47
      %s64 = sphi 0, %s48
      %s70 = sphi 0, %s72
      %s73 = sphi 0, %s70
      %s74 = sphi 0, %s73
      %s90 = sphi 0, %s74
      %s94 = sphi 0, %s94
      %s96 = sphi 0, %s94
      %s97 = sphi 0, %s96
      %s111 = sphi 0, %s97
      %s119 = sphi 0, %s121
      %s122 = sphi 0, %s119
      %s123 = sphi 0, %s122
      %s139 = sphi 0, %s123
    $region4: #{bert_embeddings_without_norm.1} parent=1 // loop_header_branch
      %23 = sbr.rel (%p21) target = $region8
    $region5: #{bert_embeddings_without_norm.1} parent=1 // loop_body
      %s25 = ssub.s32 %s20, 1
      %s26 = ssub.s32 %s20, 2
      %s33 = sadd.s32 1, %s28
      %p34 = scmp.ge.s32.totalorder %s33, 1
      %s35 = scalar_select %p34, 0, %s33
      %s36 = sadd.s32 1, %s27
      %s37 = scalar_select %p34, %s36, %s27
      %p38 = scmp.ge.s32.totalorder %s37, 2
      %s39 = scalar_select %p38, 0, %s37
      %s40 = ssub.s32 %s27, %s39
      %s41 = ssub.s32 %s28, %s35
      %s42 = sor.u32 %s40, %s41
      %p43 = scmp.eq.s32.totalorder %s42, 0
      %s45 = sadd.s32 %s44, 1
      %s46 = scalar_select %p43, %s44, %s45
      %p49 = pneg %p43
      %p50 = scmp.eq.s32.totalorder %s20, 1
      %p51 = por %p49, %p50
      %p52 = scmp.ne.s32.totalorder %s44, %s47
      %p53 = scmp.eq.s32.totalorder %s20, 0
      %p54 = por %p52, %p53
      %p55 = scmp.ne.s32.totalorder %s44, %s47
      %p56 = scmp.eq.s32.totalorder %s25, 1
      %p57 = por %p55, %p56
      %p58 = scmp.ne.s32.totalorder %s47, %s48
      %p59 = scmp.eq.s32.totalorder %s25, 0
      %p60 = por %p58, %p59
      %p61 = scmp.ne.s32.totalorder %s47, %s48
      %p62 = scmp.eq.s32.totalorder %s26, 1
      %p63 = por %p61, %p62
      %p65 = scmp.ne.s32.totalorder %s48, %s64
      %p66 = scmp.eq.s32.totalorder %s26, 0
      %p67 = por %p65, %p66
      %s68 = ssub.s32 %s28, %s35
      %p69 = scmp.eq.s32.totalorder %s68, 0
      %s71 = sadd.s32 %s70, 1
      %s72 = scalar_select %p69, %s70, %s71
      %p75 = pneg %p69
      %p76 = scmp.eq.s32.totalorder %s20, 1
      %p77 = por %p75, %p76
      %p78 = scmp.ne.s32.totalorder %s70, %s73
      %p79 = scmp.eq.s32.totalorder %s20, 0
      %p80 = por %p78, %p79
      %p81 = scmp.ne.s32.totalorder %s70, %s73
      %p82 = scmp.eq.s32.totalorder %s25, 1
      %p83 = por %p81, %p82
      %p84 = scmp.ne.s32.totalorder %s73, %s74
      %p85 = scmp.eq.s32.totalorder %s25, 0
      %p86 = por %p84, %p85
      %p87 = scmp.ne.s32.totalorder %s73, %s74
      %p88 = scmp.eq.s32.totalorder %s26, 1
      %p89 = por %p87, %p88
      %p91 = scmp.ne.s32.totalorder %s74, %s90
      %p92 = scmp.eq.s32.totalorder %s26, 0
      %p93 = por %p91, %p92
      %s95 = sadd.s32 %s94, 1
      %p98 = scmp.eq.s32.totalorder %s20, 1
      %p99 = scmp.ne.s32.totalorder %s94, %s96
      %p100 = scmp.eq.s32.totalorder %s20, 0
      %p101 = por %p99, %p100
      %p102 = scmp.ne.s32.totalorder %s94, %s96
      %p103 = scmp.eq.s32.totalorder %s25, 1
      %p104 = por %p102, %p103
      %p105 = scmp.ne.s32.totalorder %s96, %s97
      %p106 = scmp.eq.s32.totalorder %s25, 0
      %p107 = por %p105, %p106
      %p108 = scmp.ne.s32.totalorder %s96, %s97
      %p109 = scmp.eq.s32.totalorder %s26, 1
      %p110 = por %p108, %p109
      %p112 = scmp.ne.s32.totalorder %s97, %s111
      %p113 = scmp.eq.s32.totalorder %s26, 0
      %p114 = por %p112, %p113
      %s115 = ssub.s32 %s27, %s39
      %s116 = ssub.s32 %s28, %s35
      %s117 = sor.u32 %s115, %s116
      %p118 = scmp.eq.s32.totalorder %s117, 0
      %s120 = sadd.s32 %s119, 1
      %s121 = scalar_select %p118, %s119, %s120
      %p124 = pneg %p118
      %p125 = scmp.eq.s32.totalorder %s20, 1
      %p126 = por %p124, %p125
      %p127 = scmp.ne.s32.totalorder %s119, %s122
      %p128 = scmp.eq.s32.totalorder %s20, 0
      %p129 = por %p127, %p128
      %p130 = scmp.ne.s32.totalorder %s119, %s122
      %p131 = scmp.eq.s32.totalorder %s25, 1
      %p132 = por %p130, %p131
      %p133 = scmp.ne.s32.totalorder %s122, %s123
      %p134 = scmp.eq.s32.totalorder %s25, 0
      %p135 = por %p133, %p134
      %p136 = scmp.ne.s32.totalorder %s122, %s123
      %p137 = scmp.eq.s32.totalorder %s26, 1
      %p138 = por %p136, %p137
      %p140 = scmp.ne.s32.totalorder %s123, %s139
      %p141 = scmp.eq.s32.totalorder %s26, 0
      %p142 = por %p140, %p141
      %p143 = scmp.le.s32.totalorder 1, %s20
      %p144 = scmp.lt.s32.totalorder %s20, 3
      %p145 = pnand %p143, %p144
      %p146 = pneg %p145
      // Predicated region
      $region9: #{bert_embeddings_without_norm.1} parent=5 // pred_check
        _
      $region10: #{bert_embeddings_without_norm.1} parent=5 // pred_check_branch
        %148 = sbr.rel (%p145) target = $region12
      $region11: #{bert_embeddings_without_norm.1} parent=5 // pred_region
        %s149 = ssub.s32 %s20, 1
        // Predicated region
        $region13: #{bert_embeddings_without_norm.1} parent=11 // pred_check
          %p150 = pneg %p86
        $region14: #{bert_embeddings_without_norm.1} parent=11 // pred_check_branch
          %152 = sbr.rel (%p150) target = $region16
        $region15: #{bert_embeddings_without_norm.1} parent=11 // pred_region
          %p153 = scmp.lt.s32.totalorder %s30, 0
          %s154 = scalar_select %p153, %s30, 0
          %s155 = smul.addr %s154, 8
          %s156 = scalar_lea.vmem %s2, %s155
        $region16: #{bert_embeddings_without_norm.1} parent=11 // pred_fallthru
          _
        // Predicated region
        $region17: #{bert_embeddings_without_norm.1} parent=11 // pred_check
          %p157 = pneg %p107
        $region18: #{bert_embeddings_without_norm.1} parent=11 // pred_check_branch
          %159 = sbr.rel (%p157) target = $region20
        $region19: #{bert_embeddings_without_norm.1} parent=11 // pred_region
          _
        $region20: #{bert_embeddings_without_norm.1} parent=11 // pred_fallthru
          _
      $region12: #{bert_embeddings_without_norm.1} parent=5 // pred_fallthru
        _
      %p160 = scmp.lt.s32.totalorder %s20, 2
      // Predicated region
      $region21: #{bert_embeddings_without_norm.1} parent=5 // pred_check
        %p161 = pneg %p160
      $region22: #{bert_embeddings_without_norm.1} parent=5 // pred_check_branch
        %163 = sbr.rel (%p161) target = $region24
      $region23: #{bert_embeddings_without_norm.1} parent=5 // pred_region
        // Predicated region
        $region25: #{bert_embeddings_without_norm.1} parent=23 // pred_check
          %p164 = pneg %p54
        $region26: #{bert_embeddings_without_norm.1} parent=23 // pred_check_branch
          %166 = sbr.rel (%p164) target = $region28
        $region27: #{bert_embeddings_without_norm.1} parent=23 // pred_region
          %p167 = scmp.lt.s32.totalorder %s27, 1
          %s168 = scalar_select %p167, %s27, 1
          %p169 = scmp.lt.s32.totalorder %s28, 0
          %s170 = scalar_select %p169, %s28, 0
          %s171 = sadd.s32 %s170, %s168
          %s172 = smul.addr %s171, 8
          %s173 = scalar_lea.vmem %s1, %s172
        $region28: #{bert_embeddings_without_norm.1} parent=23 // pred_fallthru
          _
      $region24: #{bert_embeddings_without_norm.1} parent=5 // pred_fallthru
        _
      %p174 = scmp.le.s32.totalorder 1, %s20
      %p175 = scmp.lt.s32.totalorder %s20, 3
      %p176 = pnand %p174, %p175
      %p177 = pneg %p176
      // Predicated region
      $region29: #{bert_embeddings_without_norm.1} parent=5 // pred_check
        _
      $region30: #{bert_embeddings_without_norm.1} parent=5 // pred_check_branch
        %179 = sbr.rel (%p176) target = $region32
      $region31: #{bert_embeddings_without_norm.1} parent=5 // pred_region
        %s180 = ssub.s32 %s20, 1
        %p181 = scmp.lt.s32.totalorder %s29, 1
        %s182 = scalar_select %p181, %s29, 1
        %p183 = scmp.lt.s32.totalorder %s30, 0
        %s184 = scalar_select %p183, %s30, 0
        %s185 = sadd.s32 %s184, %s182
        %s186 = smul.addr %s185, 8
        %s187 = scalar_lea.vmem %s1, %s186
        %p188 = pneg %p60
        %p189 = pneg %p57
        %p190 = scmp.lt.s32.totalorder %s30, 0
        %s191 = scalar_select %p190, %s30, 0
        %s192 = smul.addr %s191, 8
        %s193 = scalar_lea.vmem %s2, %s192
        %p194 = pneg %p86
        %p195 = pneg %p83
        %p196 = pneg %p107
        %p197 = pneg %p104
        %p198 = pneg %p135
        %p199 = pneg %p132
        %s200 = sand.u32 %s122, 1
        %s201 = scalar_lea.sflag [#allocation7], %s200
        %s202 = sand.u32 %s122, 1
        %s203 = smul.addr %s202, 8
        %s204 = scalar_lea.vmem [#allocation6], %s203
        %p205 = scmp.lt.s32.totalorder %s29, 1
        %s206 = scalar_select %p205, %s29, 1
        %p207 = scmp.lt.s32.totalorder %s30, 0
        %s208 = scalar_select %p207, %s30, 0
        %s209 = sadd.s32 %s208, %s206
        %s210 = smul.addr %s209, 8
        %s211 = scalar_lea.vmem %s1, %s210
        %p212 = scmp.lt.s32.totalorder %s30, 0
        %s213 = scalar_select %p212, %s30, 0
        %s214 = smul.addr %s213, 8
        %s215 = scalar_lea.vmem %s2, %s214
        %s216 = smul.u32 %s30, 8
        loop: start=0, step=1, limit=8
        $region33: #{bert_embeddings_without_norm.1} parent=31 // loop_pre_header
          _
        $region34: #{bert_embeddings_without_norm.1} parent=31 // loop_header
          %s218 = sphi 0, %s222
          %p219 = scmp.ge.s32.totalorder %s218, 8
        $region35: #{bert_embeddings_without_norm.1} parent=31 // loop_header_branch
          %221 = sbr.rel (%p219) target = $region39
        $region36: #{bert_embeddings_without_norm.1} parent=31 // loop_body
          %s223 = sadd.s32 %s216, %s218
          %s224 = sshra.s32 %s223, 7
          %s225 = sand.u32 %s223, 127
          %s226 = sadd.s32 %s224, %s29
          %s227 = smul.u32 %s226, 128
          %s228 = sshra.s32 %s223, 7
          %s229 = sand.u32 %s223, 127
          %s230 = sadd.s32 %s227, %s229
          %s231 = sld [smem:[#allocation5 + %s230]]
          %p232 = scmp.gt.s32.totalorder %s231, 0
          %s233 = scalar_select %p232, %s231, 0
          %p234 = scmp.lt.s32.totalorder %s233, 63
          %s235 = scalar_select %p234, %s233, 63
          %p236 = scmp.lt.s32.totalorder %s218, 0
          %s237 = ssub.s32 0, %s218
          %s238 = scalar_select %p236, %s237, %s218
          %s239 = sand.u32 %s238, 7
          %s240 = ssub.s32 0, %s239
          %s241 = scalar_select %p236, %s240, %s239
          %p242 = scmp.ne.s32.totalorder %s241, 0
          %p243 = scmp.lt.s32.totalorder %s241, 0
          %p244 = pnand %p243, %p242
          %p245 = pneg %p244
          %s246 = sadd.s32 %s241, 8
          %s247 = scalar_select %p245, %s246, %s241
          %s248 = scalar_lea.vmem %s4, %s235
          %s249 = scalar_lea.vmem [#allocation2], %s218
          %s250 = scalar_lea.sflag [#allocation3], %s247
          %p252 = scmp.lt.u32.totalorder 1, 8
          %p253 = pneg %p252
          // Predicated region
          $region40: #{bert_embeddings_without_norm.1} parent=36 // pred_check
            _
          $region41: #{bert_embeddings_without_norm.1} parent=36 // pred_check_branch
            %255 = sbr.rel (%p252) target = $region43
          $region42: #{bert_embeddings_without_norm.1} parent=36 // pred_region
            %s271 = sand.u32 1, 7
            %p272 = scmp.eq.s32.totalorder %s271, 0
            %p273 = pneg %p272
            // Predicated region
            $region55: #{bert_embeddings_without_norm.1} parent=42 // pred_check
              _
            $region56: #{bert_embeddings_without_norm.1} parent=42 // pred_check_branch
              %275 = sbr.rel (%p272) target = $region58
            $region57: #{bert_embeddings_without_norm.1} parent=42 // pred_region
              %s276 = sand.u32 1, 7
              %s277 = ssub.s32 1, %s276
              %s278 = scalar_lea.vmem %s248, %s277
              %s279 = ssub.s32 1, %s276
              %s280 = scalar_lea.vmem %s249, %s279 [#allocation2]
              %s281 = sshll.u32 1, %s276
              %s282 = ssub.s32 %s281, 1
              loop: start=0, step=1, limit=1
              $region59: #{bert_embeddings_without_norm.1} parent=57 // loop_pre_header
                _
              $region60: #{bert_embeddings_without_norm.1} parent=57 // loop_header
                %s284 = sphi 0, %s288
                %p285 = scmp.ge.s32.totalorder %s284, 1
                %s289 = sphi %s278, %s278
                %s290 = sphi %s280, %s280
              $region61: #{bert_embeddings_without_norm.1} parent=57 // loop_header_branch
                %287 = sbr.rel (%p285) target = $region65
              $region62: #{bert_embeddings_without_norm.1} parent=57 // loop_body
                %v291 = vld [vmem:[%s289] sm:%s282]
                %292 = vst [vmem:[%s290] sm:%s282] %v291
              $region63: #{bert_embeddings_without_norm.1} parent=57 // loop_footer
                %s288 = sadd.s32 1, %s284
              $region64: #{bert_embeddings_without_norm.1} parent=57 // loop_footer_branch
                %283 = sbr.rel target = $region60
              $region65: #{bert_embeddings_without_norm.1} parent=57 // loop_exit
                _
            $region58: #{bert_embeddings_without_norm.1} parent=42 // pred_fallthru
              _
          $region43: #{bert_embeddings_without_norm.1} parent=36 // pred_fallthru
            _
          // Predicated region
          $region44: #{bert_embeddings_without_norm.1} parent=36 // pred_check
            %p256 = pneg %p252
          $region45: #{bert_embeddings_without_norm.1} parent=36 // pred_check_branch
            %258 = sbr.rel (%p256) target = $region47
          $region46: #{bert_embeddings_without_norm.1} parent=36 // pred_region
            %s259 = sshll.u32 1, 1
            %s260 = ssub.s32 %s259, 1
            loop: start=0, step=1, limit=1
            $region48: #{bert_embeddings_without_norm.1} parent=46 // loop_pre_header
              _
            $region49: #{bert_embeddings_without_norm.1} parent=46 // loop_header
              %s262 = sphi 0, %s266
              %p263 = scmp.ge.s32.totalorder %s262, 1
              %s267 = sphi %s248, %s248
              %s268 = sphi %s249, %s249
            $region50: #{bert_embeddings_without_norm.1} parent=46 // loop_header_branch
              %265 = sbr.rel (%p263) target = $region54
            $region51: #{bert_embeddings_without_norm.1} parent=46 // loop_body
              %v269 = vld [vmem:[%s267] sm:%s260]
              %270 = vst [vmem:[%s268] sm:%s260] %v269
            $region52: #{bert_embeddings_without_norm.1} parent=46 // loop_footer
              %s266 = sadd.s32 1, %s262
            $region53: #{bert_embeddings_without_norm.1} parent=46 // loop_footer_branch
              %261 = sbr.rel target = $region49
            $region54: #{bert_embeddings_without_norm.1} parent=46 // loop_exit
              _
          $region47: #{bert_embeddings_without_norm.1} parent=36 // pred_fallthru
            _
          // Predicated region
          $region66: #{bert_embeddings_without_norm.1} parent=36 // pred_check
            _
          $region67: #{bert_embeddings_without_norm.1} parent=36 // pred_check_branch
            %295 = sbr.rel (0) target = $region69
          $region68: #{bert_embeddings_without_norm.1} parent=36 // pred_region
            %296 = vsyncadd %s250, 16
          $region69: #{bert_embeddings_without_norm.1} parent=36 // pred_fallthru
            _
        $region37: #{bert_embeddings_without_norm.1} parent=31 // loop_footer
          %s222 = sadd.s32 1, %s218
        $region38: #{bert_embeddings_without_norm.1} parent=31 // loop_footer_branch
          %217 = sbr.rel target = $region34
        $region39: #{bert_embeddings_without_norm.1} parent=31 // loop_exit
          _
        loop: start=0, step=1, limit=8
        $region70: #{bert_embeddings_without_norm.1} parent=31 // loop_pre_header
          _
        $region71: #{bert_embeddings_without_norm.1} parent=31 // loop_header
          %s298 = sphi 0, %s302
          %p299 = scmp.ge.s32.totalorder %s298, 8
        $region72: #{bert_embeddings_without_norm.1} parent=31 // loop_header_branch
          %301 = sbr.rel (%p299) target = $region76
        $region73: #{bert_embeddings_without_norm.1} parent=31 // loop_body
          %p303 = scmp.lt.s32.totalorder %s298, 0
          %s304 = ssub.s32 0, %s298
          %s305 = scalar_select %p303, %s304, %s298
          %s306 = sand.u32 %s305, 7
          %s307 = ssub.s32 0, %s306
          %s308 = scalar_select %p303, %s307, %s306
          %p309 = scmp.ne.s32.totalorder %s308, 0
          %p310 = scmp.lt.s32.totalorder %s308, 0
          %p311 = pnand %p310, %p309
          %p312 = pneg %p311
          %s313 = sadd.s32 %s308, 8
          %s314 = scalar_select %p312, %s313, %s308
          %s315 = scalar_lea.sflag [#allocation3], %s314
          %s316 = smul.u32 1, 1
          %s317 = sshll.u32 %s316, 4
          %318 = dma.done %s315, %s317
          %s319 = sadd.s32 %s298, 8
          %p320 = scmp.lt.s32.totalorder %s319, 8
          // Predicated region
          $region77: #{bert_embeddings_without_norm.1} parent=73 // pred_check
            %p321 = pneg %p320
          $region78: #{bert_embeddings_without_norm.1} parent=73 // pred_check_branch
            %323 = sbr.rel (%p321) target = $region80
          $region79: #{bert_embeddings_without_norm.1} parent=73 // pred_region
            %s324 = sadd.s32 %s216, %s319
            %s325 = sshra.s32 %s324, 7
            %s326 = sand.u32 %s324, 127
            %s327 = sadd.s32 %s325, %s29
            %s328 = smul.u32 %s327, 128
            %s329 = sshra.s32 %s324, 7
            %s330 = sand.u32 %s324, 127
            %s331 = sadd.s32 %s328, %s330
            %s332 = sld [smem:[#allocation5 + %s331]]
            %p333 = scmp.gt.s32.totalorder %s332, 0
            %s334 = scalar_select %p333, %s332, 0
            %p335 = scmp.lt.s32.totalorder %s334, 63
            %s336 = scalar_select %p335, %s334, 63
            %p337 = scmp.lt.s32.totalorder %s319, 0
            %s338 = ssub.s32 0, %s319
            %s339 = scalar_select %p337, %s338, %s319
            %s340 = sand.u32 %s339, 7
            %s341 = ssub.s32 0, %s340
            %s342 = scalar_select %p337, %s341, %s340
            %p343 = scmp.ne.s32.totalorder %s342, 0
            %p344 = scmp.lt.s32.totalorder %s342, 0
            %p345 = pnand %p344, %p343
            %p346 = pneg %p345
            %s347 = sadd.s32 %s342, 8
            %s348 = scalar_select %p346, %s347, %s342
            %s349 = scalar_lea.vmem %s4, %s336
            %s350 = scalar_lea.vmem [#allocation2], %s319
            %s351 = scalar_lea.sflag [#allocation3], %s348
            %p353 = scmp.lt.u32.totalorder 1, 8
            %p354 = pneg %p353
            // Predicated region
            $region81: #{bert_embeddings_without_norm.1} parent=79 // pred_check
              _
            $region82: #{bert_embeddings_without_norm.1} parent=79 // pred_check_branch
              %356 = sbr.rel (%p353) target = $region84
            $region83: #{bert_embeddings_without_norm.1} parent=79 // pred_region
              %s372 = sand.u32 1, 7
              %p373 = scmp.eq.s32.totalorder %s372, 0
              %p374 = pneg %p373
              // Predicated region
              $region96: #{bert_embeddings_without_norm.1} parent=83 // pred_check
                _
              $region97: #{bert_embeddings_without_norm.1} parent=83 // pred_check_branch
                %376 = sbr.rel (%p373) target = $region99
              $region98: #{bert_embeddings_without_norm.1} parent=83 // pred_region
                %s377 = sand.u32 1, 7
                %s378 = ssub.s32 1, %s377
                %s379 = scalar_lea.vmem %s349, %s378
                %s380 = ssub.s32 1, %s377
                %s381 = scalar_lea.vmem %s350, %s380 [#allocation2]
                %s382 = sshll.u32 1, %s377
                %s383 = ssub.s32 %s382, 1
                loop: start=0, step=1, limit=1
                $region100: #{bert_embeddings_without_norm.1} parent=98 // loop_pre_header
                  _
                $region101: #{bert_embeddings_without_norm.1} parent=98 // loop_header
                  %s385 = sphi 0, %s389
                  %p386 = scmp.ge.s32.totalorder %s385, 1
                  %s390 = sphi %s379, %s379
                  %s391 = sphi %s381, %s381
                $region102: #{bert_embeddings_without_norm.1} parent=98 // loop_header_branch
                  %388 = sbr.rel (%p386) target = $region106
                $region103: #{bert_embeddings_without_norm.1} parent=98 // loop_body
                  %v392 = vld [vmem:[%s390] sm:%s383]
                  %393 = vst [vmem:[%s391] sm:%s383] %v392
                $region104: #{bert_embeddings_without_norm.1} parent=98 // loop_footer
                  %s389 = sadd.s32 1, %s385
                $region105: #{bert_embeddings_without_norm.1} parent=98 // loop_footer_branch
                  %384 = sbr.rel target = $region101
                $region106: #{bert_embeddings_without_norm.1} parent=98 // loop_exit
                  _
              $region99: #{bert_embeddings_without_norm.1} parent=83 // pred_fallthru
                _
            $region84: #{bert_embeddings_without_norm.1} parent=79 // pred_fallthru
              _
            // Predicated region
            $region85: #{bert_embeddings_without_norm.1} parent=79 // pred_check
              %p357 = pneg %p353
            $region86: #{bert_embeddings_without_norm.1} parent=79 // pred_check_branch
              %359 = sbr.rel (%p357) target = $region88
            $region87: #{bert_embeddings_without_norm.1} parent=79 // pred_region
              %s360 = sshll.u32 1, 1
              %s361 = ssub.s32 %s360, 1
              loop: start=0, step=1, limit=1
              $region89: #{bert_embeddings_without_norm.1} parent=87 // loop_pre_header
                _
              $region90: #{bert_embeddings_without_norm.1} parent=87 // loop_header
                %s363 = sphi 0, %s367
                %p364 = scmp.ge.s32.totalorder %s363, 1
                %s368 = sphi %s349, %s349
                %s369 = sphi %s350, %s350
              $region91: #{bert_embeddings_without_norm.1} parent=87 // loop_header_branch
                %366 = sbr.rel (%p364) target = $region95
              $region92: #{bert_embeddings_without_norm.1} parent=87 // loop_body
                %v370 = vld [vmem:[%s368] sm:%s361]
                %371 = vst [vmem:[%s369] sm:%s361] %v370
              $region93: #{bert_embeddings_without_norm.1} parent=87 // loop_footer
                %s367 = sadd.s32 1, %s363
              $region94: #{bert_embeddings_without_norm.1} parent=87 // loop_footer_branch
                %362 = sbr.rel target = $region90
              $region95: #{bert_embeddings_without_norm.1} parent=87 // loop_exit
                _
            $region88: #{bert_embeddings_without_norm.1} parent=79 // pred_fallthru
              _
            // Predicated region
            $region107: #{bert_embeddings_without_norm.1} parent=79 // pred_check
              _
            $region108: #{bert_embeddings_without_norm.1} parent=79 // pred_check_branch
              %396 = sbr.rel (0) target = $region110
            $region109: #{bert_embeddings_without_norm.1} parent=79 // pred_region
              %397 = vsyncadd %s351, 16
            $region110: #{bert_embeddings_without_norm.1} parent=79 // pred_fallthru
              _
          $region80: #{bert_embeddings_without_norm.1} parent=73 // pred_fallthru
            _
        $region74: #{bert_embeddings_without_norm.1} parent=31 // loop_footer
          %s302 = sadd.s32 1, %s298
        $region75: #{bert_embeddings_without_norm.1} parent=31 // loop_footer_branch
          %297 = sbr.rel target = $region71
        $region76: #{bert_embeddings_without_norm.1} parent=31 // loop_exit
          _
        %v398 = vld [vmem:[#allocation2] sm:$0xff]
        %v399 = vld [vmem:[%s215] sm:$0xff]
        %v400 = vld [vmem:[%s211] sm:$0xff]
        %v401 = vld [vmem:[%s3] sm:$0x3]
        %vm402 = vcmp.eq.s32.totalorder %v400, 0
        %v403 = vsel %vm402, 1, 0
        %404 = vset.pattern.permute.xlu0 0
        %405 = vperm.xlu0 %404, %v403
        %v406 = vpop.permute.xlu0 %405
        %vm407 = vcmp.eq.s32.totalorder %v406, 1
        %v408 = vlaneseq
        %v409 = vshrl.u32 %v408, 7
        %v410 = vsub.s32 0, %v409
        %v411 = vrot.slane %v401, %v410
        %v412 = vsel %vm407, %v411, 0.0
        %v413 = vadd.f32 %v412, 0.0
        %vm414 = vcmp.eq.s32.totalorder %v400, 1
        %v415 = vsel %vm414, 1, 0
        %416 = vset.pattern.permute.xlu0 0
        %417 = vperm.xlu0 %416, %v415
        %v418 = vpop.permute.xlu0 %417
        %vm419 = vcmp.eq.s32.totalorder %v418, 1
        %v420 = vlaneseq
        %v421 = vshrl.u32 %v420, 7
        %v422 = vsub.s32 1, %v421
        %v423 = vrot.slane %v401, %v422
        %v424 = vsel %vm419, %v423, 0.0
        %v425 = vadd.f32 %v413, %v424
        %v426 = vadd.f32 %v398, %v399
        %v427 = vadd.f32 %v426, %v425
        %428 = vst [vmem:[%s204] sm:$0xff] %v427
        %s429 = sand.u32 %s122, 1
        %s430 = scalar_lea.sflag [#allocation7], %s429
        %s431 = sand.u32 %s122, 1
        %s432 = smul.addr %s431, 8
        %s433 = scalar_lea.vmem [#allocation6], %s432
        // Predicated region
        $region111: #{bert_embeddings_without_norm.1} parent=31 // pred_check
          %p434 = pneg %p132
        $region112: #{bert_embeddings_without_norm.1} parent=31 // pred_check_branch
          %436 = sbr.rel (%p434) target = $region114
        $region113: #{bert_embeddings_without_norm.1} parent=31 // pred_region
          %s438 = ssub.s32 128, 128
          %439 = vsyncadd %s430, %s438
          %s440 = sadd.s32 %s30, %s29
          %s441 = smul.addr %s440, 128
          %s442 = scalar_lea.hbm %s5, %s441
          %s444 = sshll.u32 %s433, 4
          %s445 = int_to_ptr.vmem [resolvable:$true] %s444
          %447 = dma.vmem_to_hbm [thread:$0]  %s445, 128, %s442, %s430
        $region114: #{bert_embeddings_without_norm.1} parent=31 // pred_fallthru
          _
      $region32: #{bert_embeddings_without_norm.1} parent=5 // pred_fallthru
        _
      %p448 = scmp.le.s32.totalorder 2, %s20
      // Predicated region
      $region115: #{bert_embeddings_without_norm.1} parent=5 // pred_check
        %p449 = pneg %p448
      $region116: #{bert_embeddings_without_norm.1} parent=5 // pred_check_branch
        %451 = sbr.rel (%p449) target = $region118
      $region117: #{bert_embeddings_without_norm.1} parent=5 // pred_region
        %s452 = ssub.s32 %s20, 2
        // Predicated region
        $region119: #{bert_embeddings_without_norm.1} parent=117 // pred_check
          %p453 = pneg %p138
        $region120: #{bert_embeddings_without_norm.1} parent=117 // pred_check_branch
          %455 = sbr.rel (%p453) target = $region122
        $region121: #{bert_embeddings_without_norm.1} parent=117 // pred_region
          %s456 = sand.u32 %s123, 1
          %s457 = scalar_lea.sflag [#allocation7], %s456
          %s458 = sand.u32 %s123, 1
          %s459 = smul.addr %s458, 8
          %s460 = scalar_lea.vmem [#allocation6], %s459
          %461 = dma.done %s457, 128
        $region122: #{bert_embeddings_without_norm.1} parent=117 // pred_fallthru
          _
      $region118: #{bert_embeddings_without_norm.1} parent=5 // pred_fallthru
        _
    $region6: #{bert_embeddings_without_norm.1} parent=1 // loop_footer
      %s24 = sadd.s32 1, %s20
    $region7: #{bert_embeddings_without_norm.1} parent=1 // loop_footer_branch
      %19 = sbr.rel target = $region3
    $region8: #{bert_embeddings_without_norm.1} parent=1 // loop_exit
      _
    %462 = vsyncpa [#allocation7], 1
    %s463 = scalar_lea.sflag [#allocation7], 1
    %464 = vsyncpa %s463, 1
  %465 = vsyncmov [#allocation3]
  %s466 = vpop.sfrf %465
  %p467 = scmp.eq.s32.totalorder %s466, 0
  %p468 = pneg %p467
  %470 = shalt.err (%p468)
  %s471 = scalar_lea.sflag [#allocation3], 1
  %472 = vsyncmov %s471
  %s473 = vpop.sfrf %472
  %p474 = scmp.eq.s32.totalorder %s473, 0
  %p475 = pneg %p474
  %477 = shalt.err (%p475)
  %s478 = scalar_lea.sflag [#allocation3], 2
  %479 = vsyncmov %s478
  %s480 = vpop.sfrf %479
  %p481 = scmp.eq.s32.totalorder %s480, 0
  %p482 = pneg %p481
  %484 = shalt.err (%p482)
  %s485 = scalar_lea.sflag [#allocation3], 3
  %486 = vsyncmov %s485
  %s487 = vpop.sfrf %486
  %p488 = scmp.eq.s32.totalorder %s487, 0
  %p489 = pneg %p488
  %491 = shalt.err (%p489)
  %s492 = scalar_lea.sflag [#allocation3], 4
  %493 = vsyncmov %s492
  %s494 = vpop.sfrf %493
  %p495 = scmp.eq.s32.totalorder %s494, 0
  %p496 = pneg %p495
  %498 = shalt.err (%p496)
  %s499 = scalar_lea.sflag [#allocation3], 5
  %500 = vsyncmov %s499
  %s501 = vpop.sfrf %500
  %p502 = scmp.eq.s32.totalorder %s501, 0
  %p503 = pneg %p502
  %505 = shalt.err (%p503)
  %s506 = scalar_lea.sflag [#allocation3], 6
  %507 = vsyncmov %s506
  %s508 = vpop.sfrf %507
  %p509 = scmp.eq.s32.totalorder %s508, 0
  %p510 = pneg %p509
  %512 = shalt.err (%p510)
  %s513 = scalar_lea.sflag [#allocation3], 7
  %514 = vsyncmov %s513
  %s515 = vpop.sfrf %514
  %p516 = scmp.eq.s32.totalorder %s515, 0
  %p517 = pneg %p516
  %519 = shalt.err (%p517)

</llo_original>
